<compile_context>
chip_gen: v5e
topology: v5e:2x2
jax: 0.10.0
libtpu: 0.0.40
codegen_flags: <defaults>
</compile_context>

<pallas_src>
import functools

import jax
import jax.numpy as jnp
from jax.experimental import pallas as pl
from jax.experimental.pallas import tpu as pltpu

CPRELU_ALPHA = 0.25


def _cheb_attn_kernel(
    xcat_ref,      # (1, N, 2C+1)  f32   [x_re | x_im | 1]
    xcat_t_ref,    # (1, 2C+1, N)  f32   transposed features (for lane-major j-scores)
    lcat_ref,      # (1, TN, 2*(K+1)*N)  bf16  [L_re | L_im], col = k*N + j
    adj_ref,       # (1, TN, N)    int8  adjacency mask (precomputed from f32 L)
    wattn_a_ref,   # (2C+1, 2H)    f32   i-part attention weights (+bias row)
    wattn_bt_ref,  # (2H, 2C+1)    f32   j-part attention weights, transposed
    wcheb_ref,     # (2C+1, 2*(K+1)*H*P) f32  complex block Chebyshev weights
    out_ref,       # (1, TN, 2*H*P) f32  per head: [out_re(P) | out_im(P)]
):
    f32 = jnp.float32
    n = xcat_ref.shape[1]
    tn = lcat_ref.shape[1]
    kp1 = lcat_ref.shape[2] // (2 * n)
    num_heads = wattn_a_ref.shape[1] // 2
    p_out = out_ref.shape[2] // (2 * num_heads)
    khp = kp1 * num_heads * p_out

    dot = functools.partial(jnp.dot, preferred_element_type=f32)

    xcat = xcat_ref[0]        # (N, 2C+1)
    xcat_t = xcat_t_ref[0]    # (2C+1, N)

    # --- small projections (one MXU call each, f32) ---------------------------
    row0 = pl.multiple_of(pl.program_id(1) * tn, tn)
    x_tile = xcat_ref[0, pl.ds(row0, tn), :]                 # (TN, 2C+1)
    a_sc = dot(x_tile, wattn_a_ref[...])                     # (TN, 2H) = [a_re | a_im] (+bias)
    b_sc = dot(wattn_bt_ref[...], xcat_t)                    # (2H, N)  = [b_re ; b_im]
    y_all = dot(xcat, wcheb_ref[...])                        # (N, 2*KHP) = [Y_re | Y_im]

    adj = adj_ref[0].astype(f32) > 0.0                       # (TN, N) bool
    l_f32 = lcat_ref[0].astype(f32)                          # (TN, 2*(K+1)*N)

    neg = jnp.float32(-1e9)
    masked_mag = neg * neg + neg * neg                       # == ref's (-1e9)^2 + (-1e9)^2

    outs = []
    for h in range(num_heads):
        # complex attention scores (torch: CVLinear -> CPReLU -> mask -> |.|^2 softmax)
        s_re = a_sc[:, h:h + 1] + b_sc[h:h + 1, :]                       # (TN, N)
        s_im = a_sc[:, num_heads + h:num_heads + h + 1] + b_sc[num_heads + h:num_heads + h + 1, :]
        s_re = jnp.where(s_re >= 0, s_re, CPRELU_ALPHA * s_re)
        s_im = jnp.where(s_im >= 0, s_im, CPRELU_ALPHA * s_im)
        # single mask-select on the magnitude (identical to masking re/im with -1e9
        # before squaring, as the PyTorch module does)
        mag = jnp.where(adj, s_re * s_re + s_im * s_im, masked_mag)
        mx = jnp.max(mag, axis=-1, keepdims=True)
        e = jnp.exp(mag - mx)
        attn = e * pl.reciprocal(jnp.sum(e, axis=-1, keepdims=True), approx=True)

        # attention-weighted Laplacian, all K+1 taps and re|im at once -> bf16 MXU operand
        attn_tiled = jnp.concatenate([attn] * (2 * kp1), axis=1)         # (TN, 2*(K+1)*N)
        m = (l_f32 * attn_tiled).astype(jnp.bfloat16)

        # complex block RHS for head h: rows (path, k, j), cols [re(P) | im(P)]
        tops, bots = [], []
        for k in range(kp1):
            c0 = (k * num_heads + h) * p_out
            y_re = y_all[:, c0:c0 + p_out]                               # (N, P)
            y_im = y_all[:, khp + c0:khp + c0 + p_out]                   # (N, P)
            tops.append(jnp.concatenate([y_re, y_im], axis=1))
            bots.append(jnp.concatenate([-y_im, y_re], axis=1))
        y_block = jnp.concatenate(tops + bots, axis=0).astype(jnp.bfloat16)  # (2(K+1)N, 2P)

        # single heavy matmul per head: (TN, 2(K+1)N) @ (2(K+1)N, 2P) -> [out_re | out_im]
        outs.append(dot(m, y_block))                                     # (TN, 2P) f32

    out_ref[0] = jnp.concatenate(outs, axis=1)                           # lane-dense store


def cheb_conv_forward(params, x_real, x_imag, l_real, l_imag, *, row_tile=None):
    """Pallas implementation of ChebConv.forward (use_attention=True, concat_heads=True)."""
    b, n, c = x_real.shape
    kp1 = l_real.shape[1]
    num_heads = params["num_heads"]
    p_out = params["out_c_per_head"]
    khp = kp1 * num_heads * p_out
    f32 = jnp.float32

    if row_tile is None:
        row_tile = n if n <= 256 else 256
    if n % row_tile != 0:
        row_tile = n
    rt = n // row_tile

    # ---- glue: layout plumbing only (no hot-path compute) --------------------
    ones = jnp.ones((b, n, 1), f32)
    xcat = jnp.concatenate([x_real.astype(f32), x_imag.astype(f32), ones], axis=-1)  # (B,N,2C+1)
    xcat_t = jnp.transpose(xcat, (0, 2, 1))                                          # (B,2C+1,N)

    # Laplacian -> lane-dense [b, i, k*N + j], real|imag concatenated, bf16 for DMA+MXU
    lr_t = jnp.transpose(l_real, (0, 2, 1, 3)).reshape(b, n, kp1 * n)
    li_t = jnp.transpose(l_imag, (0, 2, 1, 3)).reshape(b, n, kp1 * n)
    l_cat = jnp.concatenate([lr_t, li_t], axis=-1).astype(jnp.bfloat16)              # (B,N,2(K+1)N)

    # adjacency mask from the f32 Laplacian (torch semantics), int8 to keep DMA tiny
    adj = (jnp.sum(jnp.abs(l_real), axis=1) > 1e-9).astype(jnp.int8)                 # (B,N,N)

    # attention weights: i-part (bias folded via the ones column) and transposed j-part
    w_re = params["attn_w_re"].astype(f32)   # (2C, H)
    w_im = params["attn_w_im"].astype(f32)
    w1r, w1i = w_re[:c], w_im[:c]
    w2r, w2i = w_re[c:], w_im[c:]
    b_re = params["attn_b_re"].astype(f32).reshape(1, num_heads)
    b_im = params["attn_b_im"].astype(f32).reshape(1, num_heads)
    wattn_a = jnp.concatenate([
        jnp.concatenate([w1r, w1i], axis=1),
        jnp.concatenate([-w1i, w1r], axis=1),
        jnp.concatenate([b_re, b_im], axis=1),
    ], axis=0)                                                                       # (2C+1, 2H)
    zcol = jnp.zeros((num_heads, 1), f32)
    wattn_bt = jnp.concatenate([
        jnp.concatenate([w2r.T, -w2i.T, zcol], axis=1),
        jnp.concatenate([w2i.T, w2r.T, zcol], axis=1),
    ], axis=0)                                                                       # (2H, 2C+1)

    # Chebyshev weights packed as a complex block matrix, column order (k, h, p)
    wr = params["weight_real"].astype(f32)   # (K+1, C, P*H), channel = p*H + h
    wi = params["weight_imag"].astype(f32)
    wr_cols = wr.reshape(kp1, c, p_out, num_heads).transpose(1, 0, 3, 2).reshape(c, khp)
    wi_cols = wi.reshape(kp1, c, p_out, num_heads).transpose(1, 0, 3, 2).reshape(c, khp)
    wcheb = jnp.concatenate([
        jnp.concatenate([wr_cols, wi_cols], axis=1),
        jnp.concatenate([-wi_cols, wr_cols], axis=1),
        jnp.zeros((1, 2 * khp), f32),
    ], axis=0)                                                                       # (2C+1, 2KHP)

    c2 = 2 * c + 1
    out_comb = pl.pallas_call(
        _cheb_attn_kernel,
        out_shape=jax.ShapeDtypeStruct((b, n, 2 * num_heads * p_out), f32),
        grid_spec=pltpu.PrefetchScalarGridSpec(
            num_scalar_prefetch=0,
            grid=(b, rt),
            in_specs=[
                pl.BlockSpec((1, n, c2), lambda bb, rr: (bb, 0, 0)),
                pl.BlockSpec((1, c2, n), lambda bb, rr: (bb, 0, 0)),
                pl.BlockSpec((1, row_tile, 2 * kp1 * n), lambda bb, rr: (bb, rr, 0)),
                pl.BlockSpec((1, row_tile, n), lambda bb, rr: (bb, rr, 0)),
                pl.BlockSpec((c2, 2 * num_heads), lambda bb, rr: (0, 0)),
                pl.BlockSpec((2 * num_heads, c2), lambda bb, rr: (0, 0)),
                pl.BlockSpec((c2, 2 * khp), lambda bb, rr: (0, 0)),
            ],
            out_specs=pl.BlockSpec((1, row_tile, 2 * num_heads * p_out),
                                   lambda bb, rr: (bb, rr, 0)),
        ),
        compiler_params=pltpu.CompilerParams(
            dimension_semantics=("parallel", "parallel"),
            vmem_limit_bytes=48 * 1024 * 1024,
        ),
    )(xcat, xcat_t, l_cat, adj, wattn_a, wattn_bt, wcheb)

    # glue: split per-head [re|im], interleave heads to torch's p*H+h channel order, add bias
    o = out_comb.reshape(b, n, num_heads, 2, p_out)
    out_re = jnp.transpose(o[:, :, :, 0, :], (0, 1, 3, 2)).reshape(b, n, p_out * num_heads)
    out_im = jnp.transpose(o[:, :, :, 1, :], (0, 1, 3, 2)).reshape(b, n, p_out * num_heads)
    out_re = out_re + params["bias_real"]
    out_im = out_im + params["bias_imag"]
    return out_re, out_im


def cheb_conv_reference(params, x_real, x_imag, l_real, l_imag):
    """Pure-JAX reference that mirrors the PyTorch forward op-for-op."""
    b, n, c = x_real.shape
    kp1 = l_real.shape[1]
    num_heads = params["num_heads"]
    p_out = params["out_c_per_head"]
    out_c = p_out * num_heads

    w_re, w_im = params["attn_w_re"], params["attn_w_im"]         # (2C, H)
    xi_r = jnp.broadcast_to(x_real[:, :, None, :], (b, n, n, c))
    xi_i = jnp.broadcast_to(x_imag[:, :, None, :], (b, n, n, c))
    xj_r = jnp.broadcast_to(x_real[:, None, :, :], (b, n, n, c))
    xj_i = jnp.broadcast_to(x_imag[:, None, :, :], (b, n, n, c))
    in_r = jnp.concatenate([xi_r, xj_r], axis=-1)                 # (B, N, N, 2C)
    in_i = jnp.concatenate([xi_i, xj_i], axis=-1)
    s_r = in_r @ w_re - in_i @ w_im + params["attn_b_re"]
    s_i = in_r @ w_im + in_i @ w_re + params["attn_b_im"]
    s_r = jnp.where(s_r >= 0, s_r, CPRELU_ALPHA * s_r)
    s_i = jnp.where(s_i >= 0, s_i, CPRELU_ALPHA * s_i)
    s_r = jnp.transpose(s_r, (0, 3, 1, 2))                        # (B, H, N, N)
    s_i = jnp.transpose(s_i, (0, 3, 1, 2))
    adj = jnp.sum(jnp.abs(l_real), axis=1, keepdims=True) > 1e-9  # (B, 1, N, N)
    s_r = jnp.where(adj, s_r, -1e9)
    s_i = jnp.where(adj, s_i, -1e9)
    mag = s_r ** 2 + s_i ** 2
    attn = jax.nn.softmax(mag, axis=-1)                           # (B, H, N, N)
    attn_lap = jnp.transpose(attn, (0, 2, 3, 1))[:, None]         # (B, 1, N, N, H)
    l_r = l_real[..., None] * attn_lap                            # (B, K+1, N, N, H)
    l_i = l_imag[..., None] * attn_lap

    sum_r = jnp.zeros((b, n, out_c), jnp.float32)
    sum_i = jnp.zeros((b, n, out_c), jnp.float32)
    for k in range(kp1):
        lkr, lki = l_r[:, k], l_i[:, k]
        lx_r = (jnp.einsum("bnjh,bjc->bnch", lkr, x_real)
                - jnp.einsum("bnjh,bjc->bnch", lki, x_imag))
        lx_i = (jnp.einsum("bnjh,bjc->bnch", lkr, x_imag)
                + jnp.einsum("bnjh,bjc->bnch", lki, x_real))
        wkr = params["weight_real"][k].reshape(c, p_out, num_heads)
        wki = params["weight_imag"][k].reshape(c, p_out, num_heads)
        cur_r = (jnp.einsum("bnch,cph->bnph", lx_r, wkr)
                 - jnp.einsum("bnch,cph->bnph", lx_i, wki))
        cur_i = (jnp.einsum("bnch,cph->bnph", lx_r, wki)
                 + jnp.einsum("bnch,cph->bnph", lx_i, wkr))
        sum_r = sum_r + cur_r.reshape(b, n, out_c)
        sum_i = sum_i + cur_i.reshape(b, n, out_c)
    return sum_r + params["bias_real"], sum_i + params["bias_imag"]


if __name__ == "__main__":
    key = jax.random.PRNGKey(0)
    B, N, C_in, K, H, P = 2, 16, 4, 2, 2, 8
    Kp1 = K + 1
    out_c = P * H                     # actual_out_c (concat_heads=True)
    ks = jax.random.split(key, 10)
    stdv = 1.0 / (out_c ** 0.5)

    params = {
        "num_heads": H,
        "out_c_per_head": P,
        "weight_real": jax.random.uniform(ks[0], (Kp1, C_in, out_c), jnp.float32, -stdv, stdv),
        "weight_imag": jax.random.uniform(ks[1], (Kp1, C_in, out_c), jnp.float32, -stdv, stdv),
        "attn_w_re": jax.random.uniform(ks[2], (2 * C_in, H), jnp.float32, -0.3, 0.3),
        "attn_w_im": jax.random.uniform(ks[3], (2 * C_in, H), jnp.float32, -0.3, 0.3),
        "attn_b_re": jax.random.uniform(ks[4], (H,), jnp.float32, -0.1, 0.1),
        "attn_b_im": jax.random.uniform(ks[5], (H,), jnp.float32, -0.1, 0.1),
        "bias_real": jnp.zeros((1, out_c), jnp.float32),
        "bias_imag": jnp.zeros((1, out_c), jnp.float32),
    }

    x_real = jax.random.normal(ks[6], (B, N, C_in), jnp.float32)
    x_imag = jax.random.normal(ks[7], (B, N, C_in), jnp.float32)
    l_real = jax.random.normal(ks[8], (B, Kp1, N, N), jnp.float32) * 0.2
    l_imag = jax.random.normal(ks[9], (B, Kp1, N, N), jnp.float32) * 0.2

    out_re, out_im = cheb_conv_forward(params, x_real, x_imag, l_real, l_imag)
    jax.block_until_ready((out_re, out_im))

    with jax.default_matmul_precision("highest"):
        ref_re, ref_im = cheb_conv_reference(params, x_real, x_imag, l_real, l_imag)
    jax.block_until_ready((ref_re, ref_im))

    assert out_re.shape == (B, N, out_c) and out_im.shape == (B, N, out_c)
    # tolerances account for bf16 Laplacian / MXU operands + approx softmax reciprocal
    assert jnp.allclose(out_re, ref_re, rtol=2e-2, atol=2e-3), "real part mismatch"
    assert jnp.allclose(out_im, ref_im, rtol=2e-2, atol=2e-3), "imag part mismatch"
    print("KERNEL_OK")
</pallas_src>

<mosaic_0001>
module attributes {stable_mosaic.version = 11 : i64} {
  func.func @_cheb_attn_kernel(%arg0: i32, %arg1: i32, %arg2: memref<1x16x9xf32, #tpu.memory_space<vmem>>, %arg3: memref<1x9x16xf32, #tpu.memory_space<vmem>>, %arg4: memref<1x16x96xbf16, #tpu.memory_space<vmem>>, %arg5: memref<1x16x16xi8, #tpu.memory_space<vmem>>, %arg6: memref<9x4xf32, #tpu.memory_space<vmem>>, %arg7: memref<4x9xf32, #tpu.memory_space<vmem>>, %arg8: memref<9x96xf32, #tpu.memory_space<vmem>>, %arg9: memref<1x16x32xf32, #tpu.memory_space<vmem>>) attributes {dimension_semantics = [#tpu.dimension_semantics<parallel>, #tpu.dimension_semantics<parallel>], iteration_bounds = array<i64: 2, 1>, scalar_prefetch = 0 : i64, scratch_operands = 0 : i64, tpu.core_type = #tpu.core_type<tc>, window_params = [{transform_indices = @transform_0, window_bounds = array<i64: 1, 16, 9>}, {transform_indices = @transform_1, window_bounds = array<i64: 1, 9, 16>}, {transform_indices = @transform_2, window_bounds = array<i64: 1, 16, 96>}, {transform_indices = @transform_3, window_bounds = array<i64: 1, 16, 16>}, {pipeline_mode = #tpu.pipeline_mode<synchronous>, transform_indices = @transform_4, window_bounds = array<i64: 9, 4>}, {pipeline_mode = #tpu.pipeline_mode<synchronous>, transform_indices = @transform_5, window_bounds = array<i64: 4, 9>}, {pipeline_mode = #tpu.pipeline_mode<synchronous>, transform_indices = @transform_6, window_bounds = array<i64: 9, 96>}, {transform_indices = @transform_7, window_bounds = array<i64: 1, 16, 32>}]} {
    %c0 = arith.constant 0 : index
    %c0_0 = arith.constant 0 : index
    %c0_1 = arith.constant 0 : index
    %0 = vector.load %arg2[%c0, %c0_0, %c0_1] : memref<1x16x9xf32, #tpu.memory_space<vmem>>, vector<1x16x9xf32>
    %1 = vector.shape_cast %0 : vector<1x16x9xf32> to vector<16x9xf32>
    %c0_2 = arith.constant 0 : index
    %c0_3 = arith.constant 0 : index
    %c0_4 = arith.constant 0 : index
    %2 = vector.load %arg3[%c0_2, %c0_3, %c0_4] : memref<1x9x16xf32, #tpu.memory_space<vmem>>, vector<1x9x16xf32>
    %3 = vector.shape_cast %2 : vector<1x9x16xf32> to vector<9x16xf32>
    %c16_i32 = arith.constant 16 : i32
    %4 = arith.muli %arg1, %c16_i32 : i32
    %5 = tpu.assume_multiple %4, 16 : i32
    %c0_5 = arith.constant 0 : index
    %6 = arith.index_cast %5 : i32 to index
    %c0_6 = arith.constant 0 : index
    %7 = vector.load %arg2[%c0_5, %6, %c0_6] : memref<1x16x9xf32, #tpu.memory_space<vmem>>, vector<1x16x9xf32>
    %8 = vector.shape_cast %7 : vector<1x16x9xf32> to vector<16x9xf32>
    %c0_7 = arith.constant 0 : index
    %c0_8 = arith.constant 0 : index
    %9 = vector.load %arg6[%c0_7, %c0_8] : memref<9x4xf32, #tpu.memory_space<vmem>>, vector<9x4xf32>
    %cst = arith.constant dense<0.000000e+00> : vector<16x4xf32>
    %10 = tpu.matmul %8, %9, %cst {dimension_numbers = #tpu.dot_dimension_numbers<[1], [0], [0], [1], [0, 0, 1, 1], [], []>} : vector<16x9xf32>, vector<9x4xf32>, vector<16x4xf32> -> vector<16x4xf32>
    %c0_9 = arith.constant 0 : index
    %c0_10 = arith.constant 0 : index
    %11 = vector.load %arg7[%c0_9, %c0_10] : memref<4x9xf32, #tpu.memory_space<vmem>>, vector<4x9xf32>
    %cst_11 = arith.constant dense<0.000000e+00> : vector<4x16xf32>
    %12 = tpu.matmul %11, %3, %cst_11 {dimension_numbers = #tpu.dot_dimension_numbers<[1], [0], [0], [1], [0, 0, 1, 1], [], []>} : vector<4x9xf32>, vector<9x16xf32>, vector<4x16xf32> -> vector<4x16xf32>
    %c0_12 = arith.constant 0 : index
    %c0_13 = arith.constant 0 : index
    %13 = vector.load %arg8[%c0_12, %c0_13] : memref<9x96xf32, #tpu.memory_space<vmem>>, vector<9x96xf32>
    %cst_14 = arith.constant dense<0.000000e+00> : vector<16x96xf32>
    %14 = tpu.matmul %1, %13, %cst_14 {dimension_numbers = #tpu.dot_dimension_numbers<[1], [0], [0], [1], [0, 0, 1, 1], [], []>} : vector<16x9xf32>, vector<9x96xf32>, vector<16x96xf32> -> vector<16x96xf32>
    %c0_15 = arith.constant 0 : index
    %c0_16 = arith.constant 0 : index
    %c0_17 = arith.constant 0 : index
    %15 = vector.load %arg5[%c0_15, %c0_16, %c0_17] : memref<1x16x16xi8, #tpu.memory_space<vmem>>, vector<1x16x16xi8>
    %16 = vector.shape_cast %15 : vector<1x16x16xi8> to vector<16x16xi8>
    %17 = arith.sitofp %16 : vector<16x16xi8> to vector<16x16xf32>
    %cst_18 = arith.constant 0.000000e+00 : f32
    %18 = vector.broadcast %cst_18 : f32 to vector<16x16xf32>
    %19 = arith.cmpf ogt, %17, %18 : vector<16x16xf32>
    %c0_19 = arith.constant 0 : index
    %c0_20 = arith.constant 0 : index
    %c0_21 = arith.constant 0 : index
    %20 = vector.load %arg4[%c0_19, %c0_20, %c0_21] : memref<1x16x96xbf16, #tpu.memory_space<vmem>>, vector<1x16x96xbf16>
    %21 = vector.shape_cast %20 : vector<1x16x96xbf16> to vector<16x96xbf16>
    %22 = arith.extf %21 : vector<16x96xbf16> to vector<16x96xf32>
    %cst_22 = arith.constant -1.000000e+09 : f32
    %cst_23 = arith.constant -1.000000e+09 : f32
    %23 = arith.mulf %cst_22, %cst_23 : f32
    %cst_24 = arith.constant -1.000000e+09 : f32
    %cst_25 = arith.constant -1.000000e+09 : f32
    %24 = arith.mulf %cst_24, %cst_25 : f32
    %25 = arith.addf %23, %24 : f32
    %26 = vector.extract_strided_slice %10 {offsets = [0, 0], sizes = [16, 1], strides = [1, 1]} : vector<16x4xf32> to vector<16x1xf32>
    %27 = vector.extract_strided_slice %12 {offsets = [0, 0], sizes = [1, 16], strides = [1, 1]} : vector<4x16xf32> to vector<1x16xf32>
    %28 = vector.broadcast %26 : vector<16x1xf32> to vector<16x16xf32>
    %29 = vector.broadcast %27 : vector<1x16xf32> to vector<16x16xf32>
    %30 = arith.addf %28, %29 : vector<16x16xf32>
    %31 = vector.extract_strided_slice %10 {offsets = [0, 2], sizes = [16, 1], strides = [1, 1]} : vector<16x4xf32> to vector<16x1xf32>
    %32 = vector.extract_strided_slice %12 {offsets = [2, 0], sizes = [1, 16], strides = [1, 1]} : vector<4x16xf32> to vector<1x16xf32>
    %33 = vector.broadcast %31 : vector<16x1xf32> to vector<16x16xf32>
    %34 = vector.broadcast %32 : vector<1x16xf32> to vector<16x16xf32>
    %35 = arith.addf %33, %34 : vector<16x16xf32>
    %cst_26 = arith.constant 0.000000e+00 : f32
    %36 = vector.broadcast %cst_26 : f32 to vector<16x16xf32>
    %37 = arith.cmpf oge, %30, %36 : vector<16x16xf32>
    %cst_27 = arith.constant 2.500000e-01 : f32
    %38 = vector.broadcast %cst_27 : f32 to vector<16x16xf32>
    %39 = arith.mulf %38, %30 : vector<16x16xf32>
    %40 = arith.select %37, %30, %39 : vector<16x16xi1>, vector<16x16xf32>
    %cst_28 = arith.constant 0.000000e+00 : f32
    %41 = vector.broadcast %cst_28 : f32 to vector<16x16xf32>
    %42 = arith.cmpf oge, %35, %41 : vector<16x16xf32>
    %cst_29 = arith.constant 2.500000e-01 : f32
    %43 = vector.broadcast %cst_29 : f32 to vector<16x16xf32>
    %44 = arith.mulf %43, %35 : vector<16x16xf32>
    %45 = arith.select %42, %35, %44 : vector<16x16xi1>, vector<16x16xf32>
    %46 = arith.mulf %40, %40 : vector<16x16xf32>
    %47 = arith.mulf %45, %45 : vector<16x16xf32>
    %48 = arith.addf %46, %47 : vector<16x16xf32>
    %49 = vector.broadcast %25 : f32 to vector<16x16xf32>
    %50 = arith.select %19, %48, %49 : vector<16x16xi1>, vector<16x16xf32>
    %cst_30 = arith.constant dense<0xFF800000> : vector<16xf32>
    %51 = vector.multi_reduction <maximumf>, %50, %cst_30 [1] : vector<16x16xf32> to vector<16xf32>
    %52 = vector.shape_cast %51 : vector<16xf32> to vector<16x1xf32>
    %53 = vector.broadcast %52 : vector<16x1xf32> to vector<16x16xf32>
    %54 = arith.subf %50, %53 : vector<16x16xf32>
    %55 = math.exp %54 : vector<16x16xf32>
    %cst_31 = arith.constant dense<0.000000e+00> : vector<16xf32>
    %56 = vector.multi_reduction <add>, %55, %cst_31 [1] : vector<16x16xf32> to vector<16xf32>
    %57 = vector.shape_cast %56 : vector<16xf32> to vector<16x1xf32>
    %58 = tpu.reciprocal %57 {approx = true} : vector<16x1xf32> -> vector<16x1xf32>
    %59 = vector.broadcast %58 : vector<16x1xf32> to vector<16x16xf32>
    %60 = arith.mulf %55, %59 : vector<16x16xf32>
    %61 = tpu.concatenate %60, %60, %60, %60, %60, %60 in 1 : vector<16x16xf32>, vector<16x16xf32>, vector<16x16xf32>, vector<16x16xf32>, vector<16x16xf32>, vector<16x16xf32> -> vector<16x96xf32>
    %62 = arith.mulf %22, %61 : vector<16x96xf32>
    %63 = arith.truncf %62 : vector<16x96xf32> to vector<16x96xbf16>
    %64 = vector.extract_strided_slice %14 {offsets = [0, 0], sizes = [16, 8], strides = [1, 1]} : vector<16x96xf32> to vector<16x8xf32>
    %65 = vector.extract_strided_slice %14 {offsets = [0, 48], sizes = [16, 8], strides = [1, 1]} : vector<16x96xf32> to vector<16x8xf32>
    %66 = tpu.concatenate %64, %65 in 1 : vector<16x8xf32>, vector<16x8xf32> -> vector<16x16xf32>
    %cst_32 = arith.constant 0.000000e+00 : f32
    %67 = vector.broadcast %cst_32 : f32 to vector<16x8xf32>
    %68 = arith.subf %67, %65 : vector<16x8xf32>
    %69 = tpu.concatenate %68, %64 in 1 : vector<16x8xf32>, vector<16x8xf32> -> vector<16x16xf32>
    %70 = vector.extract_strided_slice %14 {offsets = [0, 16], sizes = [16, 8], strides = [1, 1]} : vector<16x96xf32> to vector<16x8xf32>
    %71 = vector.extract_strided_slice %14 {offsets = [0, 64], sizes = [16, 8], strides = [1, 1]} : vector<16x96xf32> to vector<16x8xf32>
    %72 = tpu.concatenate %70, %71 in 1 : vector<16x8xf32>, vector<16x8xf32> -> vector<16x16xf32>
    %cst_33 = arith.constant 0.000000e+00 : f32
    %73 = vector.broadcast %cst_33 : f32 to vector<16x8xf32>
    %74 = arith.subf %73, %71 : vector<16x8xf32>
    %75 = tpu.concatenate %74, %70 in 1 : vector<16x8xf32>, vector<16x8xf32> -> vector<16x16xf32>
    %76 = vector.extract_strided_slice %14 {offsets = [0, 32], sizes = [16, 8], strides = [1, 1]} : vector<16x96xf32> to vector<16x8xf32>
    %77 = vector.extract_strided_slice %14 {offsets = [0, 80], sizes = [16, 8], strides = [1, 1]} : vector<16x96xf32> to vector<16x8xf32>
    %78 = tpu.concatenate %76, %77 in 1 : vector<16x8xf32>, vector<16x8xf32> -> vector<16x16xf32>
    %cst_34 = arith.constant 0.000000e+00 : f32
    %79 = vector.broadcast %cst_34 : f32 to vector<16x8xf32>
    %80 = arith.subf %79, %77 : vector<16x8xf32>
    %81 = tpu.concatenate %80, %76 in 1 : vector<16x8xf32>, vector<16x8xf32> -> vector<16x16xf32>
    %82 = tpu.concatenate %66, %72, %78, %69, %75, %81 in 0 : vector<16x16xf32>, vector<16x16xf32>, vector<16x16xf32>, vector<16x16xf32>, vector<16x16xf32>, vector<16x16xf32> -> vector<96x16xf32>
    %83 = arith.truncf %82 : vector<96x16xf32> to vector<96x16xbf16>
    %cst_35 = arith.constant dense<0.000000e+00> : vector<16x16xf32>
    %84 = tpu.matmul %63, %83, %cst_35 {dimension_numbers = #tpu.dot_dimension_numbers<[1], [0], [0], [1], [0, 0, 1, 1], [], []>} : vector<16x96xbf16>, vector<96x16xbf16>, vector<16x16xf32> -> vector<16x16xf32>
    %85 = vector.extract_strided_slice %10 {offsets = [0, 1], sizes = [16, 1], strides = [1, 1]} : vector<16x4xf32> to vector<16x1xf32>
    %86 = vector.extract_strided_slice %12 {offsets = [1, 0], sizes = [1, 16], strides = [1, 1]} : vector<4x16xf32> to vector<1x16xf32>
    %87 = vector.broadcast %85 : vector<16x1xf32> to vector<16x16xf32>
    %88 = vector.broadcast %86 : vector<1x16xf32> to vector<16x16xf32>
    %89 = arith.addf %87, %88 : vector<16x16xf32>
    %90 = vector.extract_strided_slice %10 {offsets = [0, 3], sizes = [16, 1], strides = [1, 1]} : vector<16x4xf32> to vector<16x1xf32>
    %91 = vector.extract_strided_slice %12 {offsets = [3, 0], sizes = [1, 16], strides = [1, 1]} : vector<4x16xf32> to vector<1x16xf32>
    %92 = vector.broadcast %90 : vector<16x1xf32> to vector<16x16xf32>
    %93 = vector.broadcast %91 : vector<1x16xf32> to vector<16x16xf32>
    %94 = arith.addf %92, %93 : vector<16x16xf32>
    %cst_36 = arith.constant 0.000000e+00 : f32
    %95 = vector.broadcast %cst_36 : f32 to vector<16x16xf32>
    %96 = arith.cmpf oge, %89, %95 : vector<16x16xf32>
    %cst_37 = arith.constant 2.500000e-01 : f32
    %97 = vector.broadcast %cst_37 : f32 to vector<16x16xf32>
    %98 = arith.mulf %97, %89 : vector<16x16xf32>
    %99 = arith.select %96, %89, %98 : vector<16x16xi1>, vector<16x16xf32>
    %cst_38 = arith.constant 0.000000e+00 : f32
    %100 = vector.broadcast %cst_38 : f32 to vector<16x16xf32>
    %101 = arith.cmpf oge, %94, %100 : vector<16x16xf32>
    %cst_39 = arith.constant 2.500000e-01 : f32
    %102 = vector.broadcast %cst_39 : f32 to vector<16x16xf32>
    %103 = arith.mulf %102, %94 : vector<16x16xf32>
    %104 = arith.select %101, %94, %103 : vector<16x16xi1>, vector<16x16xf32>
    %105 = arith.mulf %99, %99 : vector<16x16xf32>
    %106 = arith.mulf %104, %104 : vector<16x16xf32>
    %107 = arith.addf %105, %106 : vector<16x16xf32>
    %108 = vector.broadcast %25 : f32 to vector<16x16xf32>
    %109 = arith.select %19, %107, %108 : vector<16x16xi1>, vector<16x16xf32>
    %cst_40 = arith.constant dense<0xFF800000> : vector<16xf32>
    %110 = vector.multi_reduction <maximumf>, %109, %cst_40 [1] : vector<16x16xf32> to vector<16xf32>
    %111 = vector.shape_cast %110 : vector<16xf32> to vector<16x1xf32>
    %112 = vector.broadcast %111 : vector<16x1xf32> to vector<16x16xf32>
    %113 = arith.subf %109, %112 : vector<16x16xf32>
    %114 = math.exp %113 : vector<16x16xf32>
    %cst_41 = arith.constant dense<0.000000e+00> : vector<16xf32>
    %115 = vector.multi_reduction <add>, %114, %cst_41 [1] : vector<16x16xf32> to vector<16xf32>
    %116 = vector.shape_cast %115 : vector<16xf32> to vector<16x1xf32>
    %117 = tpu.reciprocal %116 {approx = true} : vector<16x1xf32> -> vector<16x1xf32>
    %118 = vector.broadcast %117 : vector<16x1xf32> to vector<16x16xf32>
    %119 = arith.mulf %114, %118 : vector<16x16xf32>
    %120 = tpu.concatenate %119, %119, %119, %119, %119, %119 in 1 : vector<16x16xf32>, vector<16x16xf32>, vector<16x16xf32>, vector<16x16xf32>, vector<16x16xf32>, vector<16x16xf32> -> vector<16x96xf32>
    %121 = arith.mulf %22, %120 : vector<16x96xf32>
    %122 = arith.truncf %121 : vector<16x96xf32> to vector<16x96xbf16>
    %123 = vector.extract_strided_slice %14 {offsets = [0, 8], sizes = [16, 8], strides = [1, 1]} : vector<16x96xf32> to vector<16x8xf32>
    %124 = vector.extract_strided_slice %14 {offsets = [0, 56], sizes = [16, 8], strides = [1, 1]} : vector<16x96xf32> to vector<16x8xf32>
    %125 = tpu.concatenate %123, %124 in 1 : vector<16x8xf32>, vector<16x8xf32> -> vector<16x16xf32>
    %cst_42 = arith.constant 0.000000e+00 : f32
    %126 = vector.broadcast %cst_42 : f32 to vector<16x8xf32>
    %127 = arith.subf %126, %124 : vector<16x8xf32>
    %128 = tpu.concatenate %127, %123 in 1 : vector<16x8xf32>, vector<16x8xf32> -> vector<16x16xf32>
    %129 = vector.extract_strided_slice %14 {offsets = [0, 24], sizes = [16, 8], strides = [1, 1]} : vector<16x96xf32> to vector<16x8xf32>
    %130 = vector.extract_strided_slice %14 {offsets = [0, 72], sizes = [16, 8], strides = [1, 1]} : vector<16x96xf32> to vector<16x8xf32>
    %131 = tpu.concatenate %129, %130 in 1 : vector<16x8xf32>, vector<16x8xf32> -> vector<16x16xf32>
    %cst_43 = arith.constant 0.000000e+00 : f32
    %132 = vector.broadcast %cst_43 : f32 to vector<16x8xf32>
    %133 = arith.subf %132, %130 : vector<16x8xf32>
    %134 = tpu.concatenate %133, %129 in 1 : vector<16x8xf32>, vector<16x8xf32> -> vector<16x16xf32>
    %135 = vector.extract_strided_slice %14 {offsets = [0, 40], sizes = [16, 8], strides = [1, 1]} : vector<16x96xf32> to vector<16x8xf32>
    %136 = vector.extract_strided_slice %14 {offsets = [0, 88], sizes = [16, 8], strides = [1, 1]} : vector<16x96xf32> to vector<16x8xf32>
    %137 = tpu.concatenate %135, %136 in 1 : vector<16x8xf32>, vector<16x8xf32> -> vector<16x16xf32>
    %cst_44 = arith.constant 0.000000e+00 : f32
    %138 = vector.broadcast %cst_44 : f32 to vector<16x8xf32>
    %139 = arith.subf %138, %136 : vector<16x8xf32>
    %140 = tpu.concatenate %139, %135 in 1 : vector<16x8xf32>, vector<16x8xf32> -> vector<16x16xf32>
    %141 = tpu.concatenate %125, %131, %137, %128, %134, %140 in 0 : vector<16x16xf32>, vector<16x16xf32>, vector<16x16xf32>, vector<16x16xf32>, vector<16x16xf32>, vector<16x16xf32> -> vector<96x16xf32>
    %142 = arith.truncf %141 : vector<96x16xf32> to vector<96x16xbf16>
    %cst_45 = arith.constant dense<0.000000e+00> : vector<16x16xf32>
    %143 = tpu.matmul %122, %142, %cst_45 {dimension_numbers = #tpu.dot_dimension_numbers<[1], [0], [0], [1], [0, 0, 1, 1], [], []>} : vector<16x96xbf16>, vector<96x16xbf16>, vector<16x16xf32> -> vector<16x16xf32>
    %144 = tpu.concatenate %84, %143 in 1 : vector<16x16xf32>, vector<16x16xf32> -> vector<16x32xf32>
    %c0_46 = arith.constant 0 : index
    %c0_47 = arith.constant 0 : index
    %c0_48 = arith.constant 0 : index
    %145 = vector.load %arg9[%c0_46, %c0_47, %c0_48] : memref<1x16x32xf32, #tpu.memory_space<vmem>>, vector<1x16x32xf32>
    %146 = vector.shape_cast %145 : vector<1x16x32xf32> to vector<16x32xf32>
    %147 = vector.shape_cast %144 : vector<16x32xf32> to vector<1x16x32xf32>
    tpu.vector_store %arg9[%c0_46, %c0_47, %c0_48], %147 {strides = array<i32>} : memref<1x16x32xf32, #tpu.memory_space<vmem>>, vector<1x16x32xf32>,
    return
  }
  func.func @transform_0(%arg0: i32, %arg1: i32) -> (i32, i32, i32) {
    %c0_i32 = arith.constant 0 : i32
    %c0_i32_0 = arith.constant 0 : i32
    %c0_i32_1 = arith.constant 0 : i32
    return %arg0, %c0_i32, %c0_i32_0 : i32, i32, i32
  }
  func.func @transform_1(%arg0: i32, %arg1: i32) -> (i32, i32, i32) {
    %c0_i32 = arith.constant 0 : i32
    %c0_i32_0 = arith.constant 0 : i32
    %c0_i32_1 = arith.constant 0 : i32
    return %arg0, %c0_i32, %c0_i32_0 : i32, i32, i32
  }
  func.func @transform_2(%arg0: i32, %arg1: i32) -> (i32, i32, i32) {
    %c0_i32 = arith.constant 0 : i32
    %c0_i32_0 = arith.constant 0 : i32
    return %arg0, %arg1, %c0_i32 : i32, i32, i32
  }
  func.func @transform_3(%arg0: i32, %arg1: i32) -> (i32, i32, i32) {
    %c0_i32 = arith.constant 0 : i32
    %c0_i32_0 = arith.constant 0 : i32
    return %arg0, %arg1, %c0_i32 : i32, i32, i32
  }
  func.func @transform_4(%arg0: i32, %arg1: i32) -> (i32, i32) {
    %c0_i32 = arith.constant 0 : i32
    %c0_i32_0 = arith.constant 0 : i32
    %c0_i32_1 = arith.constant 0 : i32
    return %c0_i32, %c0_i32_0 : i32, i32
  }
  func.func @transform_5(%arg0: i32, %arg1: i32) -> (i32, i32) {
    %c0_i32 = arith.constant 0 : i32
    %c0_i32_0 = arith.constant 0 : i32
    %c0_i32_1 = arith.constant 0 : i32
    return %c0_i32, %c0_i32_0 : i32, i32
  }
  func.func @transform_6(%arg0: i32, %arg1: i32) -> (i32, i32) {
    %c0_i32 = arith.constant 0 : i32
    %c0_i32_0 = arith.constant 0 : i32
    %c0_i32_1 = arith.constant 0 : i32
    return %c0_i32, %c0_i32_0 : i32, i32
  }
  func.func @transform_7(%arg0: i32, %arg1: i32) -> (i32, i32, i32) {
    %c0_i32 = arith.constant 0 : i32
    %c0_i32_0 = arith.constant 0 : i32
    return %arg0, %arg1, %c0_i32 : i32, i32, i32
  }
}

</mosaic_0001>

<llo_original>
// kernel: tpu_custom_call.1
$region0: #{tpu_custom_call.1}
  #allocation0 [shape = 'u32[]', space=smem, size = 0x4, offset = 0x4, fixed_abs, tag = 'smem constant byte address 0x4 - core index']
  #allocation1 [shape = 'u32[72,128]{1,0:T(1,128)}', space=vmem, size = 0x9000, scoped, tag = 'internal scratch']
  %s0 = inlined_call_operand.vmem [shape: f32[2,16,9], index: 0, kind: input, shape index: {}]
  %s1 = inlined_call_operand.vmem [shape: f32[2,9,16], index: 1, kind: input, shape index: {}]
  %s2 = inlined_call_operand.vmem [shape: bf16[2,16,96], index: 2, kind: input, shape index: {}]
  %s3 = inlined_call_operand.vmem [shape: s8[2,16,16], index: 3, kind: input, shape index: {}]
  %s4 = inlined_call_operand.vmem [shape: f32[9,4], index: 4, kind: input, shape index: {}]
  %s5 = inlined_call_operand.vmem [shape: f32[4,9], index: 5, kind: input, shape index: {}]
  %s6 = inlined_call_operand.vmem [shape: f32[9,96], index: 6, kind: input, shape index: {}]
  %s7 = inlined_call_operand.hbm [shape: f32[2,16,32], index: 7, kind: output, shape index: {}]
  %s8 = sld [smem:[#allocation0]]
  $region61: #{tpu_custom_call.1} parent=0
    _
  %s10 = ssub.s32 1, %s8
  %s11 = scalar_select 0, %s10, %s8
  $region1: #{tpu_custom_call.1} parent=0
    #allocation2 [shape = 'u8[16384]{0}', space=vmem, size = 0x4000, scoped, tag = 'output window, operand 0']
    #allocation3 [shape = 's32[2]{0}', space=sflag, size = 0x8, scoped, tag = 'scoped memory for tpu_custom_call.1']
    %12 = vsyncpa [#allocation3], 0
    %s13 = scalar_lea.sflag [#allocation3], 1
    %14 = vsyncpa %s13, 0
    loop: start=0, step=1, limit=4
    $region2: #{tpu_custom_call.1} parent=1 // loop_pre_header
      _
    $region3: #{tpu_custom_call.1} parent=1 // loop_header
      %s16 = sphi 0, %s20
      %p17 = scmp.ge.s32.totalorder %s16, 4
      %s23 = sphi 0, %s35
      %s24 = sphi 0, %s31
      %s25 = sphi 0, %s23
      %s26 = sphi 0, %s24
      %s27 = sphi 0, %s25
      %s28 = sphi 0, %s26
      %s38 = sphi 0, %s40
      %s41 = sphi 0, %s38
      %s42 = sphi 0, %s41
      %s58 = sphi 0, %s42
      %s64 = sphi 0, %s66
      %s67 = sphi 0, %s64
      %s68 = sphi 0, %s67
      %s84 = sphi 0, %s68
      %s92 = sphi 0, %s94
      %s95 = sphi 0, %s92
      %s96 = sphi 0, %s95
      %s112 = sphi 0, %s96
      %s120 = sphi 0, %s122
      %s123 = sphi 0, %s120
      %s124 = sphi 0, %s123
      %s140 = sphi 0, %s124
      %s144 = sphi 0, %s144
      %s146 = sphi 0, %s144
      %s147 = sphi 0, %s146
      %s161 = sphi 0, %s147
      %s165 = sphi 0, %s165
      %s167 = sphi 0, %s165
      %s168 = sphi 0, %s167
      %s182 = sphi 0, %s168
      %s186 = sphi 0, %s186
      %s188 = sphi 0, %s186
      %s189 = sphi 0, %s188
      %s203 = sphi 0, %s189
      %s211 = sphi 0, %s213
      %s214 = sphi 0, %s211
      %s215 = sphi 0, %s214
      %s231 = sphi 0, %s215
    $region4: #{tpu_custom_call.1} parent=1 // loop_header_branch
      %19 = sbr.rel (%p17) target = $region8
    $region5: #{tpu_custom_call.1} parent=1 // loop_body
      %s21 = ssub.s32 %s16, 1
      %s22 = ssub.s32 %s16, 2
      %s29 = sadd.s32 1, %s24
      %p30 = scmp.ge.s32.totalorder %s29, 1
      %s31 = scalar_select %p30, 0, %s29
      %s32 = sadd.s32 1, %s23
      %s33 = scalar_select %p30, %s32, %s23
      %p34 = scmp.ge.s32.totalorder %s33, 2
      %s35 = scalar_select %p34, 0, %s33
      %s36 = ssub.s32 %s23, %s35
      %p37 = scmp.eq.s32.totalorder %s36, 0
      %s39 = sadd.s32 %s38, 1
      %s40 = scalar_select %p37, %s38, %s39
      %p43 = pneg %p37
      %p44 = scmp.eq.s32.totalorder %s16, 1
      %p45 = por %p43, %p44
      %p46 = scmp.ne.s32.totalorder %s38, %s41
      %p47 = scmp.eq.s32.totalorder %s16, 0
      %p48 = por %p46, %p47
      %p49 = scmp.ne.s32.totalorder %s38, %s41
      %p50 = scmp.eq.s32.totalorder %s21, 1
      %p51 = por %p49, %p50
      %p52 = scmp.ne.s32.totalorder %s41, %s42
      %p53 = scmp.eq.s32.totalorder %s21, 0
      %p54 = por %p52, %p53
      %p55 = scmp.ne.s32.totalorder %s41, %s42
      %p56 = scmp.eq.s32.totalorder %s22, 1
      %p57 = por %p55, %p56
      %p59 = scmp.ne.s32.totalorder %s42, %s58
      %p60 = scmp.eq.s32.totalorder %s22, 0
      %p61 = por %p59, %p60
      %s62 = ssub.s32 %s23, %s35
      %p63 = scmp.eq.s32.totalorder %s62, 0
      %s65 = sadd.s32 %s64, 1
      %s66 = scalar_select %p63, %s64, %s65
      %p69 = pneg %p63
      %p70 = scmp.eq.s32.totalorder %s16, 1
      %p71 = por %p69, %p70
      %p72 = scmp.ne.s32.totalorder %s64, %s67
      %p73 = scmp.eq.s32.totalorder %s16, 0
      %p74 = por %p72, %p73
      %p75 = scmp.ne.s32.totalorder %s64, %s67
      %p76 = scmp.eq.s32.totalorder %s21, 1
      %p77 = por %p75, %p76
      %p78 = scmp.ne.s32.totalorder %s67, %s68
      %p79 = scmp.eq.s32.totalorder %s21, 0
      %p80 = por %p78, %p79
      %p81 = scmp.ne.s32.totalorder %s67, %s68
      %p82 = scmp.eq.s32.totalorder %s22, 1
      %p83 = por %p81, %p82
      %p85 = scmp.ne.s32.totalorder %s68, %s84
      %p86 = scmp.eq.s32.totalorder %s22, 0
      %p87 = por %p85, %p86
      %s88 = ssub.s32 %s23, %s35
      %s89 = ssub.s32 %s24, %s31
      %s90 = sor.u32 %s88, %s89
      %p91 = scmp.eq.s32.totalorder %s90, 0
      %s93 = sadd.s32 %s92, 1
      %s94 = scalar_select %p91, %s92, %s93
      %p97 = pneg %p91
      %p98 = scmp.eq.s32.totalorder %s16, 1
      %p99 = por %p97, %p98
      %p100 = scmp.ne.s32.totalorder %s92, %s95
      %p101 = scmp.eq.s32.totalorder %s16, 0
      %p102 = por %p100, %p101
      %p103 = scmp.ne.s32.totalorder %s92, %s95
      %p104 = scmp.eq.s32.totalorder %s21, 1
      %p105 = por %p103, %p104
      %p106 = scmp.ne.s32.totalorder %s95, %s96
      %p107 = scmp.eq.s32.totalorder %s21, 0
      %p108 = por %p106, %p107
      %p109 = scmp.ne.s32.totalorder %s95, %s96
      %p110 = scmp.eq.s32.totalorder %s22, 1
      %p111 = por %p109, %p110
      %p113 = scmp.ne.s32.totalorder %s96, %s112
      %p114 = scmp.eq.s32.totalorder %s22, 0
      %p115 = por %p113, %p114
      %s116 = ssub.s32 %s23, %s35
      %s117 = ssub.s32 %s24, %s31
      %s118 = sor.u32 %s116, %s117
      %p119 = scmp.eq.s32.totalorder %s118, 0
      %s121 = sadd.s32 %s120, 1
      %s122 = scalar_select %p119, %s120, %s121
      %p125 = pneg %p119
      %p126 = scmp.eq.s32.totalorder %s16, 1
      %p127 = por %p125, %p126
      %p128 = scmp.ne.s32.totalorder %s120, %s123
      %p129 = scmp.eq.s32.totalorder %s16, 0
      %p130 = por %p128, %p129
      %p131 = scmp.ne.s32.totalorder %s120, %s123
      %p132 = scmp.eq.s32.totalorder %s21, 1
      %p133 = por %p131, %p132
      %p134 = scmp.ne.s32.totalorder %s123, %s124
      %p135 = scmp.eq.s32.totalorder %s21, 0
      %p136 = por %p134, %p135
      %p137 = scmp.ne.s32.totalorder %s123, %s124
      %p138 = scmp.eq.s32.totalorder %s22, 1
      %p139 = por %p137, %p138
      %p141 = scmp.ne.s32.totalorder %s124, %s140
      %p142 = scmp.eq.s32.totalorder %s22, 0
      %p143 = por %p141, %p142
      %s145 = sadd.s32 %s144, 1
      %p148 = scmp.eq.s32.totalorder %s16, 1
      %p149 = scmp.ne.s32.totalorder %s144, %s146
      %p150 = scmp.eq.s32.totalorder %s16, 0
      %p151 = por %p149, %p150
      %p152 = scmp.ne.s32.totalorder %s144, %s146
      %p153 = scmp.eq.s32.totalorder %s21, 1
      %p154 = por %p152, %p153
      %p155 = scmp.ne.s32.totalorder %s146, %s147
      %p156 = scmp.eq.s32.totalorder %s21, 0
      %p157 = por %p155, %p156
      %p158 = scmp.ne.s32.totalorder %s146, %s147
      %p159 = scmp.eq.s32.totalorder %s22, 1
      %p160 = por %p158, %p159
      %p162 = scmp.ne.s32.totalorder %s147, %s161
      %p163 = scmp.eq.s32.totalorder %s22, 0
      %p164 = por %p162, %p163
      %s166 = sadd.s32 %s165, 1
      %p169 = scmp.eq.s32.totalorder %s16, 1
      %p170 = scmp.ne.s32.totalorder %s165, %s167
      %p171 = scmp.eq.s32.totalorder %s16, 0
      %p172 = por %p170, %p171
      %p173 = scmp.ne.s32.totalorder %s165, %s167
      %p174 = scmp.eq.s32.totalorder %s21, 1
      %p175 = por %p173, %p174
      %p176 = scmp.ne.s32.totalorder %s167, %s168
      %p177 = scmp.eq.s32.totalorder %s21, 0
      %p178 = por %p176, %p177
      %p179 = scmp.ne.s32.totalorder %s167, %s168
      %p180 = scmp.eq.s32.totalorder %s22, 1
      %p181 = por %p179, %p180
      %p183 = scmp.ne.s32.totalorder %s168, %s182
      %p184 = scmp.eq.s32.totalorder %s22, 0
      %p185 = por %p183, %p184
      %s187 = sadd.s32 %s186, 1
      %p190 = scmp.eq.s32.totalorder %s16, 1
      %p191 = scmp.ne.s32.totalorder %s186, %s188
      %p192 = scmp.eq.s32.totalorder %s16, 0
      %p193 = por %p191, %p192
      %p194 = scmp.ne.s32.totalorder %s186, %s188
      %p195 = scmp.eq.s32.totalorder %s21, 1
      %p196 = por %p194, %p195
      %p197 = scmp.ne.s32.totalorder %s188, %s189
      %p198 = scmp.eq.s32.totalorder %s21, 0
      %p199 = por %p197, %p198
      %p200 = scmp.ne.s32.totalorder %s188, %s189
      %p201 = scmp.eq.s32.totalorder %s22, 1
      %p202 = por %p200, %p201
      %p204 = scmp.ne.s32.totalorder %s189, %s203
      %p205 = scmp.eq.s32.totalorder %s22, 0
      %p206 = por %p204, %p205
      %s207 = ssub.s32 %s23, %s35
      %s208 = ssub.s32 %s24, %s31
      %s209 = sor.u32 %s207, %s208
      %p210 = scmp.eq.s32.totalorder %s209, 0
      %s212 = sadd.s32 %s211, 1
      %s213 = scalar_select %p210, %s211, %s212
      %p216 = pneg %p210
      %p217 = scmp.eq.s32.totalorder %s16, 1
      %p218 = por %p216, %p217
      %p219 = scmp.ne.s32.totalorder %s211, %s214
      %p220 = scmp.eq.s32.totalorder %s16, 0
      %p221 = por %p219, %p220
      %p222 = scmp.ne.s32.totalorder %s211, %s214
      %p223 = scmp.eq.s32.totalorder %s21, 1
      %p224 = por %p222, %p223
      %p225 = scmp.ne.s32.totalorder %s214, %s215
      %p226 = scmp.eq.s32.totalorder %s21, 0
      %p227 = por %p225, %p226
      %p228 = scmp.ne.s32.totalorder %s214, %s215
      %p229 = scmp.eq.s32.totalorder %s22, 1
      %p230 = por %p228, %p229
      %p232 = scmp.ne.s32.totalorder %s215, %s231
      %p233 = scmp.eq.s32.totalorder %s22, 0
      %p234 = por %p232, %p233
      %p235 = scmp.le.s32.totalorder 1, %s16
      %p236 = scmp.lt.s32.totalorder %s16, 3
      %p237 = pnand %p235, %p236
      %p238 = pneg %p237
      // Predicated region
      $region9: #{tpu_custom_call.1} parent=5 // pred_check
        _
      $region10: #{tpu_custom_call.1} parent=5 // pred_check_branch
        %240 = sbr.rel (%p237) target = $region12
      $region11: #{tpu_custom_call.1} parent=5 // pred_region
        %s241 = ssub.s32 %s16, 1
        // Predicated region
        $region13: #{tpu_custom_call.1} parent=11 // pred_check
          %p242 = pneg %p157
        $region14: #{tpu_custom_call.1} parent=11 // pred_check_branch
          %244 = sbr.rel (%p242) target = $region16
        $region15: #{tpu_custom_call.1} parent=11 // pred_region
          _
        $region16: #{tpu_custom_call.1} parent=11 // pred_fallthru
          _
        // Predicated region
        $region17: #{tpu_custom_call.1} parent=11 // pred_check
          %p245 = pneg %p178
        $region18: #{tpu_custom_call.1} parent=11 // pred_check_branch
          %247 = sbr.rel (%p245) target = $region20
        $region19: #{tpu_custom_call.1} parent=11 // pred_region
          _
        $region20: #{tpu_custom_call.1} parent=11 // pred_fallthru
          _
        // Predicated region
        $region21: #{tpu_custom_call.1} parent=11 // pred_check
          %p248 = pneg %p199
        $region22: #{tpu_custom_call.1} parent=11 // pred_check_branch
          %250 = sbr.rel (%p248) target = $region24
        $region23: #{tpu_custom_call.1} parent=11 // pred_region
          _
        $region24: #{tpu_custom_call.1} parent=11 // pred_fallthru
          _
      $region12: #{tpu_custom_call.1} parent=5 // pred_fallthru
        _
      %p251 = scmp.lt.s32.totalorder %s16, 2
      // Predicated region
      $region25: #{tpu_custom_call.1} parent=5 // pred_check
        %p252 = pneg %p251
      $region26: #{tpu_custom_call.1} parent=5 // pred_check_branch
        %254 = sbr.rel (%p252) target = $region28
      $region27: #{tpu_custom_call.1} parent=5 // pred_region
        // Predicated region
        $region29: #{tpu_custom_call.1} parent=27 // pred_check
          %p255 = pneg %p48
        $region30: #{tpu_custom_call.1} parent=27 // pred_check_branch
          %257 = sbr.rel (%p255) target = $region32
        $region31: #{tpu_custom_call.1} parent=27 // pred_region
          %p258 = scmp.lt.s32.totalorder %s23, 1
          %s259 = scalar_select %p258, %s23, 1
          %s260 = smul.addr %s259, 2
          %s261 = smul.addr %s260, 8
          %s262 = scalar_lea.vmem %s0, %s261
        $region32: #{tpu_custom_call.1} parent=27 // pred_fallthru
          _
        // Predicated region
        $region33: #{tpu_custom_call.1} parent=27 // pred_check
          %p263 = pneg %p74
        $region34: #{tpu_custom_call.1} parent=27 // pred_check_branch
          %265 = sbr.rel (%p263) target = $region36
        $region35: #{tpu_custom_call.1} parent=27 // pred_region
          %p266 = scmp.lt.s32.totalorder %s23, 1
          %s267 = scalar_select %p266, %s23, 1
          %s268 = smul.addr %s267, 2
          %s269 = smul.addr %s268, 8
          %s270 = scalar_lea.vmem %s1, %s269
        $region36: #{tpu_custom_call.1} parent=27 // pred_fallthru
          _
        // Predicated region
        $region37: #{tpu_custom_call.1} parent=27 // pred_check
          %p271 = pneg %p102
        $region38: #{tpu_custom_call.1} parent=27 // pred_check_branch
          %273 = sbr.rel (%p271) target = $region40
        $region39: #{tpu_custom_call.1} parent=27 // pred_region
          %s274 = smul.u32 2, %s24
          %p275 = scmp.lt.s32.totalorder %s23, 1
          %s276 = scalar_select %p275, %s23, 1
          %p277 = scmp.lt.s32.totalorder %s274, 1
          %s278 = scalar_select %p277, %s274, 1
          %s279 = smul.addr %s276, 2
          %s280 = sadd.s32 %s278, %s279
          %s281 = smul.addr %s280, 4
          %s282 = scalar_lea.vmem %s2, %s281
          %s283 = smul.u32 2, %s24
        $region40: #{tpu_custom_call.1} parent=27 // pred_fallthru
          _
        // Predicated region
        $region41: #{tpu_custom_call.1} parent=27 // pred_check
          %p284 = pneg %p130
        $region42: #{tpu_custom_call.1} parent=27 // pred_check_branch
          %286 = sbr.rel (%p284) target = $region44
        $region43: #{tpu_custom_call.1} parent=27 // pred_region
          %s287 = smul.u32 2, %s24
          %p288 = scmp.lt.s32.totalorder %s23, 1
          %s289 = scalar_select %p288, %s23, 1
          %p290 = scmp.lt.s32.totalorder %s287, 1
          %s291 = scalar_select %p290, %s287, 1
          %s292 = smul.addr %s289, 2
          %s293 = sadd.s32 %s291, %s292
          %s294 = smul.addr %s293, 2
          %s295 = scalar_lea.vmem %s3, %s294
          %s296 = smul.u32 2, %s24
        $region44: #{tpu_custom_call.1} parent=27 // pred_fallthru
          _
      $region28: #{tpu_custom_call.1} parent=5 // pred_fallthru
        _
      %p297 = scmp.le.s32.totalorder 1, %s16
      %p298 = scmp.lt.s32.totalorder %s16, 3
      %p299 = pnand %p297, %p298
      %p300 = pneg %p299
      // Predicated region
      $region45: #{tpu_custom_call.1} parent=5 // pred_check
        _
      $region46: #{tpu_custom_call.1} parent=5 // pred_check_branch
        %302 = sbr.rel (%p299) target = $region48
      $region47: #{tpu_custom_call.1} parent=5 // pred_region
        %s303 = ssub.s32 %s16, 1
        %p304 = scmp.lt.s32.totalorder %s25, 1
        %s305 = scalar_select %p304, %s25, 1
        %s306 = smul.addr %s305, 2
        %s307 = smul.addr %s306, 8
        %s308 = scalar_lea.vmem %s0, %s307
        %p309 = pneg %p54
        %p310 = pneg %p51
        %p311 = scmp.lt.s32.totalorder %s25, 1
        %s312 = scalar_select %p311, %s25, 1
        %s313 = smul.addr %s312, 2
        %s314 = smul.addr %s313, 8
        %s315 = scalar_lea.vmem %s1, %s314
        %p316 = pneg %p80
        %p317 = pneg %p77
        %s318 = smul.u32 2, %s26
        %p319 = scmp.lt.s32.totalorder %s25, 1
        %s320 = scalar_select %p319, %s25, 1
        %p321 = scmp.lt.s32.totalorder %s318, 1
        %s322 = scalar_select %p321, %s318, 1
        %s323 = smul.addr %s320, 2
        %s324 = sadd.s32 %s322, %s323
        %s325 = smul.addr %s324, 4
        %s326 = scalar_lea.vmem %s2, %s325
        %p327 = pneg %p108
        %p328 = pneg %p105
        %s329 = smul.u32 2, %s26
        %p330 = scmp.lt.s32.totalorder %s25, 1
        %s331 = scalar_select %p330, %s25, 1
        %p332 = scmp.lt.s32.totalorder %s329, 1
        %s333 = scalar_select %p332, %s329, 1
        %s334 = smul.addr %s331, 2
        %s335 = sadd.s32 %s333, %s334
        %s336 = smul.addr %s335, 2
        %s337 = scalar_lea.vmem %s3, %s336
        %p338 = pneg %p136
        %p339 = pneg %p133
        %p340 = pneg %p157
        %p341 = pneg %p154
        %p342 = pneg %p178
        %p343 = pneg %p175
        %p344 = pneg %p199
        %p345 = pneg %p196
        %p346 = pneg %p227
        %p347 = pneg %p224
        %s348 = sand.u32 %s214, 1
        %s349 = scalar_lea.sflag [#allocation3], %s348
        %s350 = sand.u32 %s214, 1
        %s351 = smul.addr %s350, 16
        %s352 = scalar_lea.vmem [#allocation2], %s351
        %p353 = scmp.lt.s32.totalorder %s25, 1
        %s354 = scalar_select %p353, %s25, 1
        %s355 = smul.addr %s354, 2
        %s356 = smul.addr %s355, 8
        %s357 = scalar_lea.vmem %s0, %s356
        %p358 = scmp.lt.s32.totalorder %s25, 1
        %s359 = scalar_select %p358, %s25, 1
        %s360 = smul.addr %s359, 2
        %s361 = smul.addr %s360, 8
        %s362 = scalar_lea.vmem %s1, %s361
        %s363 = smul.u32 2, %s26
        %p364 = scmp.lt.s32.totalorder %s25, 1
        %s365 = scalar_select %p364, %s25, 1
        %p366 = scmp.lt.s32.totalorder %s363, 1
        %s367 = scalar_select %p366, %s363, 1
        %s368 = smul.addr %s365, 2
        %s369 = sadd.s32 %s367, %s368
        %s370 = smul.addr %s369, 4
        %s371 = scalar_lea.vmem %s2, %s370
        %s372 = smul.u32 2, %s26
        %s373 = smul.u32 2, %s26
        %p374 = scmp.lt.s32.totalorder %s25, 1
        %s375 = scalar_select %p374, %s25, 1
        %p376 = scmp.lt.s32.totalorder %s373, 1
        %s377 = scalar_select %p376, %s373, 1
        %s378 = smul.addr %s375, 2
        %s379 = sadd.s32 %s377, %s378
        %s380 = smul.addr %s379, 2
        %s381 = scalar_lea.vmem %s3, %s380
        %s382 = smul.u32 2, %s26
        %s383 = smul.u32 2, %s26
        %v385 = vld [vmem:[%s357] sm:$0xff]
        %v386 = vld [vmem:[%s357 + $0x8] sm:$0xff]
        %v387 = vld [vmem:[%s362] sm:$0xff]
        %v388 = vld [vmem:[%s362 + $0x8] sm:$0x1]
        %s389 = smul.u32 %s26, 16
        %s390 = scalar_lea.vmem %s357, %s389
        %v391 = vld [vmem:[%s390] sm:$0xff]
        %v392 = vld [vmem:[%s390 + $0x8] sm:$0xff]
        %v393 = vld [vmem:[%s4] sm:$0xff]
        %v394 = vld [vmem:[%s4 + $0x8] sm:$0x1]
        %vm395 = vcmask 72704
        %v397 = vsel %vm395, %v391, 0
        %v400 = vsel %vm395, %v392, 0
        %vm402 = vcmask 1040384
        %v404 = vsel %vm402, %v394, 0
        %406 = vmatpush.msra.mxu0 0.0
        %407 = vmatpush.msra.mxu0 0.0
        %408 = vmatpush.msra.mxu0 0.0
        %409 = vmatpush.msra.mxu0 0.0
        %410 = vmatpush.msra.mxu0 0.0
        %411 = vmatpush.msra.mxu0 0.0
        %412 = vmatpush.msra.mxu0 0.0
        %413 = vmatpush.msra.mxu0 0.0
        %414 = vmatpush.msra.mxu0 0.0
        %415 = vmatpush.msra.mxu0 0.0
        %416 = vmatpush.msra.mxu0 0.0
        %417 = vmatpush.msra.mxu0 0.0
        %418 = vmatpush.msra.mxu0 0.0
        %419 = vmatpush.msra.mxu0 0.0
        %420 = vmatpush.msra.mxu0 %v404
        %421 = vmatpush.msra.mxu0 %v393
        %422 = vmatmul.f32.gmra.mxu0 %v397
        %v423 = vpop.f32.mrf.mxu0
        %v424 = vadd.f32 0.0, %v423
        %425 = vmatmul.f32.gmra.mxu0 %v400
        %v426 = vpop.f32.mrf.mxu0
        %v427 = vadd.f32 0.0, %v426
        %428 = vdwg.mxu0
        %v429 = vld [vmem:[%s5] sm:$0xf]
        %v431 = vsel %vm395, %v429, 0
        %v434 = vsel %vm402, %v388, 0
        %436 = vmatpush.msra.mxu0 0.0
        %437 = vmatpush.msra.mxu0 0.0
        %438 = vmatpush.msra.mxu0 0.0
        %439 = vmatpush.msra.mxu0 0.0
        %440 = vmatpush.msra.mxu0 0.0
        %441 = vmatpush.msra.mxu0 0.0
        %442 = vmatpush.msra.mxu0 0.0
        %443 = vmatpush.msra.mxu0 0.0
        %444 = vmatpush.msra.mxu0 0.0
        %445 = vmatpush.msra.mxu0 0.0
        %446 = vmatpush.msra.mxu0 0.0
        %447 = vmatpush.msra.mxu0 0.0
        %448 = vmatpush.msra.mxu0 0.0
        %449 = vmatpush.msra.mxu0 0.0
        %450 = vmatpush.msra.mxu0 %v434
        %451 = vmatpush.msra.mxu0 %v387
        %452 = vmatmul.f32.gmra.mxu0 %v431
        %v453 = vpop.f32.mrf.mxu0
        %v454 = vadd.f32 0.0, %v453
        %455 = vdwg.mxu0
        %v456 = vld [vmem:[%s6] sm:$0xff]
        %v457 = vld [vmem:[%s6 + $0x8] sm:$0x1]
        %v459 = vsel %vm395, %v385, 0
        %v462 = vsel %vm395, %v386, 0
        %v465 = vsel %vm402, %v457, 0
        %467 = vmatpush.msra.mxu0 0.0
        %468 = vmatpush.msra.mxu0 0.0
        %469 = vmatpush.msra.mxu0 0.0
        %470 = vmatpush.msra.mxu0 0.0
        %471 = vmatpush.msra.mxu0 0.0
        %472 = vmatpush.msra.mxu0 0.0
        %473 = vmatpush.msra.mxu0 0.0
        %474 = vmatpush.msra.mxu0 0.0
        %475 = vmatpush.msra.mxu0 0.0
        %476 = vmatpush.msra.mxu0 0.0
        %477 = vmatpush.msra.mxu0 0.0
        %478 = vmatpush.msra.mxu0 0.0
        %479 = vmatpush.msra.mxu0 0.0
        %480 = vmatpush.msra.mxu0 0.0
        %481 = vmatpush.msra.mxu0 %v465
        %482 = vmatpush.msra.mxu0 %v456
        %483 = vmatmul.f32.gmra.mxu0 %v459
        %v484 = vpop.f32.mrf.mxu0
        %v485 = vadd.f32 0.0, %v484
        %486 = vmatmul.f32.gmra.mxu0 %v462
        %v487 = vpop.f32.mrf.mxu0
        %v488 = vadd.f32 0.0, %v487
        %489 = vdwg.mxu0
        %v490 = vld [vmem:[%s381] sm:$0x3]
        %v491 = vld [vmem:[%s381 + $0x2] sm:$0x3]
        %v492 = vunpack.c.0.s8 %v490
        %v493 = vunpack.c.0.s8 %v491
        %v494 = vcvt.s32.f32 %v492
        %v495 = vcvt.s32.f32 %v493
        %vm496 = vcmp.gt.f32.partialorder %v494, 0.0
        %vm497 = vcmp.gt.f32.partialorder %v495, 0.0
        %v498 = vld [vmem:[%s371] sm:$0xf]
        %v499 = vld [vmem:[%s371 + $0x4] sm:$0xf]
        %v500 = vunpack.c.l.bf16 %v498
        %v501 = vunpack.c.l.bf16 %v499
        %503 = vset.pattern.permute.xlu0 0
        %504 = vperm.xlu0 %503, %v424
        %v505 = vpop.permute.xlu0 %504
        %508 = vset.pattern.permute.xlu0 0
        %509 = vperm.xlu0 %508, %v427
        %v510 = vpop.permute.xlu0 %509
        %v512 = vperm.slane %v454, 0
        %v513 = vadd.f32 %v505, %v512
        %v514 = vadd.f32 %v510, %v512
        %515 = vset.pattern.permute.xlu0 2
        %516 = vperm.xlu0 %515, %v424
        %v517 = vpop.permute.xlu0 %516
        %519 = vset.pattern.permute.xlu0 2
        %520 = vperm.xlu0 %519, %v427
        %v521 = vpop.permute.xlu0 %520
        %v523 = vperm.slane %v454, 2
        %v524 = vadd.f32 %v517, %v523
        %v525 = vadd.f32 %v521, %v523
        %vm526 = vcmp.ge.f32.partialorder %v513, 0.0
        %vm527 = vcmp.ge.f32.partialorder %v514, 0.0
        %v528 = vmul.f32 %v513, 0.25
        %v529 = vmul.f32 %v514, 0.25
        %v530 = vsel %vm526, %v513, %v528
        %v531 = vsel %vm527, %v514, %v529
        %vm532 = vcmp.ge.f32.partialorder %v524, 0.0
        %vm533 = vcmp.ge.f32.partialorder %v525, 0.0
        %v534 = vmul.f32 %v524, 0.25
        %v535 = vmul.f32 %v525, 0.25
        %v536 = vsel %vm532, %v524, %v534
        %v537 = vsel %vm533, %v525, %v535
        %v538 = vmul.f32 %v530, %v530
        %v539 = vmul.f32 %v531, %v531
        %v540 = vmul.f32 %v536, %v536
        %v541 = vmul.f32 %v537, %v537
        %v542 = vadd.f32 %v538, %v540
        %v543 = vadd.f32 %v539, %v541
        %v544 = vsel %vm496, %v542, 2e+18
        %v545 = vsel %vm497, %v543, 2e+18
        %vm546 = vcmask 130048
        %v547 = vsel %vm546, %v544, -inf
        %548 = vmax.xlane.f32.xlu0 %v547
        %v549 = vpop.xlane.xlu0 %548
        %v550 = vsel %vm546, %v545, -inf
        %551 = vmax.xlane.f32.xlu0 %v550
        %v552 = vpop.xlane.xlu0 %551
        %v553 = vsub.f32 %v544, %v549
        %v554 = vsub.f32 %v545, %v552
        %v555 = vmul.f32 %v553, 1.442695
        %v556 = vpow.pop %v555
        %v557 = vmul.f32 %v554, 1.442695
        %v558 = vpow.pop %v557
        %v559 = vsel %vm546, %v556, 0.0
        %560 = vadd.xlane.f32.xlu0 %v559
        %v561 = vpop.xlane.xlu0 %560
        %v562 = vsel %vm546, %v558, 0.0
        %563 = vadd.xlane.f32.xlu0 %v562
        %v564 = vpop.xlane.xlu0 %563
        %v565 = vrcp.pop %v561
        %v566 = vrcp.pop %v564
        %v567 = vmul.f32 %v556, %v565
        %v568 = vmul.f32 %v558, %v566
        %571 = vrot.lane.b32.xlu0 %v567, 16
        %v572 = vpop.permute.xlu0 %571
        %573 = vrot.lane.b32.xlu0 %v568, 16
        %v574 = vpop.permute.xlu0 %573
        %577 = vrot.lane.b32.xlu0 %v567, 32
        %v578 = vpop.permute.xlu0 %577
        %579 = vrot.lane.b32.xlu0 %v568, 32
        %v580 = vpop.permute.xlu0 %579
        %583 = vrot.lane.b32.xlu0 %v567, 48
        %v584 = vpop.permute.xlu0 %583
        %585 = vrot.lane.b32.xlu0 %v568, 48
        %v586 = vpop.permute.xlu0 %585
        %589 = vrot.lane.b32.xlu0 %v567, 64
        %v590 = vpop.permute.xlu0 %589
        %591 = vrot.lane.b32.xlu0 %v568, 64
        %v592 = vpop.permute.xlu0 %591
        %595 = vrot.lane.b32.xlu0 %v567, 80
        %v596 = vpop.permute.xlu0 %595
        %597 = vrot.lane.b32.xlu0 %v568, 80
        %v598 = vpop.permute.xlu0 %597
        %v601 = vsel %vm546, %v567, %v572
        %v602 = vsel %vm546, %v568, %v574
        %vm603 = vcmask 261120
        %v604 = vsel %vm603, %v601, %v578
        %v605 = vsel %vm603, %v602, %v580
        %vm606 = vcmask 392192
        %v607 = vsel %vm606, %v604, %v584
        %v608 = vsel %vm606, %v605, %v586
        %vm609 = vcmask 523264
        %v610 = vsel %vm609, %v607, %v590
        %v611 = vsel %vm609, %v608, %v592
        %vm612 = vcmask 654336
        %v613 = vsel %vm612, %v610, %v596
        %v614 = vsel %vm612, %v611, %v598
        %v615 = vmul.f32 %v500, %v613
        %v616 = vmul.f32 %v501, %v614
        %v617 = vpack.c.bf16 %v616, %v615
        %620 = vrot.lane.b32.xlu0 %v485, 88
        %v621 = vpop.permute.xlu0 %620
        %622 = vrot.lane.b32.xlu0 %v488, 88
        %v623 = vpop.permute.xlu0 %622
        %vm626 = vcmask 64512
        %v627 = vsel %vm626, %v485, %v621
        %v628 = vsel %vm626, %v488, %v623
        %v629 = vsub.f32 0.0, %v485
        %v630 = vsub.f32 0.0, %v488
        %633 = vrot.lane.b32.xlu0 %v629, 80
        %v634 = vpop.permute.xlu0 %633
        %635 = vrot.lane.b32.xlu0 %v630, 80
        %v636 = vpop.permute.xlu0 %635
        %639 = vrot.lane.b32.xlu0 %v485, 8
        %v640 = vpop.permute.xlu0 %639
        %641 = vrot.lane.b32.xlu0 %v488, 8
        %v642 = vpop.permute.xlu0 %641
        %v645 = vsel %vm626, %v634, %v640
        %v646 = vsel %vm626, %v636, %v642
        %647 = vrot.lane.b32.xlu0 %v485, 112
        %v648 = vpop.permute.xlu0 %647
        %649 = vrot.lane.b32.xlu0 %v488, 112
        %v650 = vpop.permute.xlu0 %649
        %653 = vrot.lane.b32.xlu0 %v485, 72
        %v654 = vpop.permute.xlu0 %653
        %655 = vrot.lane.b32.xlu0 %v488, 72
        %v656 = vpop.permute.xlu0 %655
        %v659 = vsel %vm626, %v648, %v654
        %v660 = vsel %vm626, %v650, %v656
        %661 = vrot.lane.b32.xlu0 %v629, 64
        %v662 = vpop.permute.xlu0 %661
        %663 = vrot.lane.b32.xlu0 %v630, 64
        %v664 = vpop.permute.xlu0 %663
        %667 = vrot.lane.b32.xlu0 %v485, 120
        %v668 = vpop.permute.xlu0 %667
        %669 = vrot.lane.b32.xlu0 %v488, 120
        %v670 = vpop.permute.xlu0 %669
        %v673 = vsel %vm626, %v662, %v668
        %v674 = vsel %vm626, %v664, %v670
        %675 = vrot.lane.b32.xlu0 %v485, 96
        %v676 = vpop.permute.xlu0 %675
        %677 = vrot.lane.b32.xlu0 %v488, 96
        %v678 = vpop.permute.xlu0 %677
        %681 = vrot.lane.b32.xlu0 %v485, 56
        %v682 = vpop.permute.xlu0 %681
        %683 = vrot.lane.b32.xlu0 %v488, 56
        %v684 = vpop.permute.xlu0 %683
        %v687 = vsel %vm626, %v676, %v682
        %v688 = vsel %vm626, %v678, %v684
        %689 = vrot.lane.b32.xlu0 %v629, 48
        %v690 = vpop.permute.xlu0 %689
        %691 = vrot.lane.b32.xlu0 %v630, 48
        %v692 = vpop.permute.xlu0 %691
        %695 = vrot.lane.b32.xlu0 %v485, 104
        %v696 = vpop.permute.xlu0 %695
        %697 = vrot.lane.b32.xlu0 %v488, 104
        %v698 = vpop.permute.xlu0 %697
        %v701 = vsel %vm626, %v690, %v696
        %v702 = vsel %vm626, %v692, %v698
        %v703 = vpack.c.bf16 %v628, %v627
        %v704 = vpack.c.bf16 %v660, %v659
        %v705 = vpack.c.bf16 %v688, %v687
        %v706 = vpack.c.bf16 %v646, %v645
        %v707 = vpack.c.bf16 %v674, %v673
        %v708 = vpack.c.bf16 %v702, %v701
        %vm709 = vcmask 785408
        %v711 = vsel %vm709, %v617, 0
        %713 = vmatpush.bf16.msra.mxu0 0
        %714 = vmatpush.bf16.msra.mxu0 0
        %715 = vmatpush.bf16.msra.mxu0 %v708
        %716 = vmatpush.bf16.msra.mxu0 %v707
        %717 = vmatpush.bf16.msra.mxu0 %v706
        %718 = vmatpush.bf16.msra.mxu0 %v705
        %719 = vmatpush.bf16.msra.mxu0 %v704
        %720 = vmatpush.bf16.msra.mxu0 %v703
        %721 = vmatmul.bf16.gmra.mxu0 %v711
        %v722 = vpop.f32.mrf.mxu0
        %v723 = vadd.f32 0.0, %v722
        %v724 = vpop.f32.mrf.mxu0
        %v725 = vadd.f32 0.0, %v724
        %726 = vdwg.mxu0
        %727 = vset.pattern.permute.xlu0 1
        %728 = vperm.xlu0 %727, %v424
        %v729 = vpop.permute.xlu0 %728
        %731 = vset.pattern.permute.xlu0 1
        %732 = vperm.xlu0 %731, %v427
        %v733 = vpop.permute.xlu0 %732
        %v735 = vperm.slane %v454, 1
        %v736 = vadd.f32 %v729, %v735
        %v737 = vadd.f32 %v733, %v735
        %738 = vset.pattern.permute.xlu0 3
        %739 = vperm.xlu0 %738, %v424
        %v740 = vpop.permute.xlu0 %739
        %742 = vset.pattern.permute.xlu0 3
        %743 = vperm.xlu0 %742, %v427
        %v744 = vpop.permute.xlu0 %743
        %v746 = vperm.slane %v454, 3
        %v747 = vadd.f32 %v740, %v746
        %v748 = vadd.f32 %v744, %v746
        %vm749 = vcmp.ge.f32.partialorder %v736, 0.0
        %vm750 = vcmp.ge.f32.partialorder %v737, 0.0
        %v751 = vmul.f32 %v736, 0.25
        %v752 = vmul.f32 %v737, 0.25
        %v753 = vsel %vm749, %v736, %v751
        %v754 = vsel %vm750, %v737, %v752
        %vm755 = vcmp.ge.f32.partialorder %v747, 0.0
        %vm756 = vcmp.ge.f32.partialorder %v748, 0.0
        %v757 = vmul.f32 %v747, 0.25
        %v758 = vmul.f32 %v748, 0.25
        %v759 = vsel %vm755, %v747, %v757
        %v760 = vsel %vm756, %v748, %v758
        %v761 = vmul.f32 %v753, %v753
        %v762 = vmul.f32 %v754, %v754
        %v763 = vmul.f32 %v759, %v759
        %v764 = vmul.f32 %v760, %v760
        %v765 = vadd.f32 %v761, %v763
        %v766 = vadd.f32 %v762, %v764
        %v767 = vsel %vm496, %v765, 2e+18
        %v768 = vsel %vm497, %v766, 2e+18
        %v769 = vsel %vm546, %v767, -inf
        %770 = vmax.xlane.f32.xlu0 %v769
        %v771 = vpop.xlane.xlu0 %770
        %v772 = vsel %vm546, %v768, -inf
        %773 = vmax.xlane.f32.xlu0 %v772
        %v774 = vpop.xlane.xlu0 %773
        %v775 = vsub.f32 %v767, %v771
        %v776 = vsub.f32 %v768, %v774
        %v777 = vmul.f32 %v775, 1.442695
        %v778 = vpow.pop %v777
        %v779 = vmul.f32 %v776, 1.442695
        %v780 = vpow.pop %v779
        %v781 = vsel %vm546, %v778, 0.0
        %782 = vadd.xlane.f32.xlu0 %v781
        %v783 = vpop.xlane.xlu0 %782
        %v784 = vsel %vm546, %v780, 0.0
        %785 = vadd.xlane.f32.xlu0 %v784
        %v786 = vpop.xlane.xlu0 %785
        %v787 = vrcp.pop %v783
        %v788 = vrcp.pop %v786
        %v789 = vmul.f32 %v778, %v787
        %v790 = vmul.f32 %v780, %v788
        %793 = vrot.lane.b32.xlu0 %v789, 16
        %v794 = vpop.permute.xlu0 %793
        %795 = vrot.lane.b32.xlu0 %v790, 16
        %v796 = vpop.permute.xlu0 %795
        %799 = vrot.lane.b32.xlu0 %v789, 32
        %v800 = vpop.permute.xlu0 %799
        %801 = vrot.lane.b32.xlu0 %v790, 32
        %v802 = vpop.permute.xlu0 %801
        %805 = vrot.lane.b32.xlu0 %v789, 48
        %v806 = vpop.permute.xlu0 %805
        %807 = vrot.lane.b32.xlu0 %v790, 48
        %v808 = vpop.permute.xlu0 %807
        %811 = vrot.lane.b32.xlu0 %v789, 64
        %v812 = vpop.permute.xlu0 %811
        %813 = vrot.lane.b32.xlu0 %v790, 64
        %v814 = vpop.permute.xlu0 %813
        %817 = vrot.lane.b32.xlu0 %v789, 80
        %v818 = vpop.permute.xlu0 %817
        %819 = vrot.lane.b32.xlu0 %v790, 80
        %v820 = vpop.permute.xlu0 %819
        %v823 = vsel %vm546, %v789, %v794
        %v824 = vsel %vm546, %v790, %v796
        %v825 = vsel %vm603, %v823, %v800
        %v826 = vsel %vm603, %v824, %v802
        %v827 = vsel %vm606, %v825, %v806
        %v828 = vsel %vm606, %v826, %v808
        %v829 = vsel %vm609, %v827, %v812
        %v830 = vsel %vm609, %v828, %v814
        %v831 = vsel %vm612, %v829, %v818
        %v832 = vsel %vm612, %v830, %v820
        %v833 = vmul.f32 %v500, %v831
        %v834 = vmul.f32 %v501, %v832
        %v835 = vpack.c.bf16 %v834, %v833
        %836 = vrot.lane.b32.xlu0 %v485, 80
        %v837 = vpop.permute.xlu0 %836
        %838 = vrot.lane.b32.xlu0 %v488, 80
        %v839 = vpop.permute.xlu0 %838
        %v842 = vsel %vm626, %v668, %v837
        %v843 = vsel %vm626, %v670, %v839
        %844 = vrot.lane.b32.xlu0 %v629, 72
        %v845 = vpop.permute.xlu0 %844
        %846 = vrot.lane.b32.xlu0 %v630, 72
        %v847 = vpop.permute.xlu0 %846
        %v850 = vsel %vm626, %v845, %v485
        %v851 = vsel %vm626, %v847, %v488
        %852 = vrot.lane.b32.xlu0 %v485, 64
        %v853 = vpop.permute.xlu0 %852
        %854 = vrot.lane.b32.xlu0 %v488, 64
        %v855 = vpop.permute.xlu0 %854
        %v858 = vsel %vm626, %v696, %v853
        %v859 = vsel %vm626, %v698, %v855
        %860 = vrot.lane.b32.xlu0 %v629, 56
        %v861 = vpop.permute.xlu0 %860
        %862 = vrot.lane.b32.xlu0 %v630, 56
        %v863 = vpop.permute.xlu0 %862
        %v866 = vsel %vm626, %v861, %v648
        %v867 = vsel %vm626, %v863, %v650
        %868 = vrot.lane.b32.xlu0 %v485, 48
        %v869 = vpop.permute.xlu0 %868
        %870 = vrot.lane.b32.xlu0 %v488, 48
        %v871 = vpop.permute.xlu0 %870
        %v874 = vsel %vm626, %v621, %v869
        %v875 = vsel %vm626, %v623, %v871
        %876 = vrot.lane.b32.xlu0 %v629, 40
        %v877 = vpop.permute.xlu0 %876
        %878 = vrot.lane.b32.xlu0 %v630, 40
        %v879 = vpop.permute.xlu0 %878
        %v882 = vsel %vm626, %v877, %v676
        %v883 = vsel %vm626, %v879, %v678
        %v884 = vpack.c.bf16 %v843, %v842
        %v885 = vpack.c.bf16 %v859, %v858
        %v886 = vpack.c.bf16 %v875, %v874
        %v887 = vpack.c.bf16 %v851, %v850
        %v888 = vpack.c.bf16 %v867, %v866
        %v889 = vpack.c.bf16 %v883, %v882
        %v891 = vsel %vm709, %v835, 0
        %893 = vmatpush.bf16.msra.mxu0 0
        %894 = vmatpush.bf16.msra.mxu0 0
        %895 = vmatpush.bf16.msra.mxu0 %v889
        %896 = vmatpush.bf16.msra.mxu0 %v888
        %897 = vmatpush.bf16.msra.mxu0 %v887
        %898 = vmatpush.bf16.msra.mxu0 %v886
        %899 = vmatpush.bf16.msra.mxu0 %v885
        %900 = vmatpush.bf16.msra.mxu0 %v884
        %901 = vmatmul.bf16.gmra.mxu0 %v891
        %v902 = vpop.f32.mrf.mxu0
        %v903 = vadd.f32 0.0, %v902
        %v904 = vpop.f32.mrf.mxu0
        %v905 = vadd.f32 0.0, %v904
        %906 = vdwg.mxu0
        %909 = vrot.lane.b32.xlu0 %v903, 16
        %v910 = vpop.permute.xlu0 %909
        %911 = vrot.lane.b32.xlu0 %v905, 16
        %v912 = vpop.permute.xlu0 %911
        %v915 = vsel %vm546, %v723, %v910
        %v916 = vsel %vm546, %v725, %v912
        %917 = vst.msk [vmem:[%s352] sm:$0xff] %vm603, %v915
        %918 = vst.msk [vmem:[%s352 + $0x8] sm:$0xff] %vm603, %v916
        %s919 = sand.u32 %s214, 1
        %s920 = scalar_lea.sflag [#allocation3], %s919
        %s921 = sand.u32 %s214, 1
        %s922 = smul.addr %s921, 16
        %s923 = scalar_lea.vmem [#allocation2], %s922
        // Predicated region
        $region49: #{tpu_custom_call.1} parent=47 // pred_check
          %p924 = pneg %p224
        $region50: #{tpu_custom_call.1} parent=47 // pred_check_branch
          %926 = sbr.rel (%p924) target = $region52
        $region51: #{tpu_custom_call.1} parent=47 // pred_region
          %s927 = smul.u32 2, %s26
          %929 = vsyncadd %s920, 0
          %s930 = smul.addr %s25, 2
          %s931 = sadd.s32 %s927, %s930
          %s932 = smul.addr %s931, 8
          %s933 = scalar_lea.hbm %s7, %s932
          %s934 = sshll.u32 %s923, 4
          %s935 = int_to_ptr.vmem [resolvable:$true] %s934
          %s936 = sshll.u32 %s933, 4
          %s937 = int_to_ptr.hbm [resolvable:$true] %s936
          %942 = dma.vmem_to_hbm [thread:$0]  %s935, 256, %s937, %s920, 128, 128, 8
        $region52: #{tpu_custom_call.1} parent=47 // pred_fallthru
          _
      $region48: #{tpu_custom_call.1} parent=5 // pred_fallthru
        _
      %p943 = scmp.le.s32.totalorder 2, %s16
      // Predicated region
      $region53: #{tpu_custom_call.1} parent=5 // pred_check
        %p944 = pneg %p943
      $region54: #{tpu_custom_call.1} parent=5 // pred_check_branch
        %946 = sbr.rel (%p944) target = $region56
      $region55: #{tpu_custom_call.1} parent=5 // pred_region
        %s947 = ssub.s32 %s16, 2
        // Predicated region
        $region57: #{tpu_custom_call.1} parent=55 // pred_check
          %p948 = pneg %p230
        $region58: #{tpu_custom_call.1} parent=55 // pred_check_branch
          %950 = sbr.rel (%p948) target = $region60
        $region59: #{tpu_custom_call.1} parent=55 // pred_region
          %s951 = sand.u32 %s215, 1
          %s952 = scalar_lea.sflag [#allocation3], %s951
          %s953 = sand.u32 %s215, 1
          %s954 = smul.addr %s953, 16
          %s955 = scalar_lea.vmem [#allocation2], %s954
          %957 = dma.done %s952, 256
        $region60: #{tpu_custom_call.1} parent=55 // pred_fallthru
          _
      $region56: #{tpu_custom_call.1} parent=5 // pred_fallthru
        _
    $region6: #{tpu_custom_call.1} parent=1 // loop_footer
      %s20 = sadd.s32 1, %s16
    $region7: #{tpu_custom_call.1} parent=1 // loop_footer_branch
      %15 = sbr.rel target = $region3
    $region8: #{tpu_custom_call.1} parent=1 // loop_exit
      _
    %958 = vsyncpa [#allocation3], 1
    %s959 = scalar_lea.sflag [#allocation3], 1
    %960 = vsyncpa %s959, 1

</llo_original>
